<compile_context>
chip_gen: v6e
topology: v6e:2x2x1
jax: 0.10.0
libtpu: 0.0.40
codegen_flags: <defaults>
</compile_context>

<pallas_src>
import jax
import jax.numpy as jnp
from jax import lax
from jax.experimental import pallas as pl
from jax.experimental.pallas import tpu as pltpu

_NCORES = 2  # leading "parallel" grid axis (megacore split on v7x; harmless elsewhere)


def _round_up(x, m):
    return ((x + m - 1) // m) * m


# ----------------------------------------------------------------------------
# Pallas kernel: all elementwise / reduction hot-path work on lane-dense slabs.
# ----------------------------------------------------------------------------
def _make_loss_kernel(m_total, tile_m):
    eps = float(jnp.finfo(jnp.float32).eps)

    def kernel(loc_p_ref, loc_t_ref, conf_ref, sample_ref, conf_t_ref, out_ref):
        p = pl.program_id(0)
        i = pl.program_id(1)
        inner = pl.num_programs(1)

        @pl.when(i == 0)
        def _():
            out_ref[...] = jnp.zeros_like(out_ref)

        conf_t = conf_t_ref[...]                       # (1, T) int32 matched labels
        pos = conf_t > 0

        # mask for padded columns (only matters for the unconditional BCE sum)
        col = ((p * inner + i) * tile_m
               + lax.broadcasted_iota(jnp.int32, (1, tile_m), 1))
        valid = col < m_total

        # ---- GIoU loss over positive priors (rows = left/right) -------------
        loc_p = loc_p_ref[...]                         # (2, T) f32
        loc_t = loc_t_ref[...]                         # (2, T) f32
        p_l, p_r = loc_p[0:1, :], loc_p[1:2, :]
        t_l, t_r = loc_t[0:1, :], loc_t[1:2, :]
        pred_area = p_l + p_r
        targ_area = t_l + t_r
        inter = jnp.minimum(p_l, t_l) + jnp.minimum(p_r, t_r)
        union = targ_area + pred_area - inter
        ious = inter / jnp.maximum(union, eps)
        ac_union = jnp.maximum(p_l, t_l) + jnp.maximum(p_r, t_r)
        gious = ious - (ac_union - union) / jnp.maximum(ac_union, eps)
        giou_loss = jnp.where(pos, 1.0 - gious, 0.0)   # masked sum == gather+sum
        out_ref[0:1, :] += giou_loss

        # ---- softmax over classes (classes live on the sublane axis) --------
        logits = conf_ref[...].astype(jnp.float32)     # (C, T)
        mx = jnp.max(logits, axis=0, keepdims=True)
        e = jnp.exp(logits - mx)
        inv_den = pl.reciprocal(jnp.sum(e, axis=0, keepdims=True), approx=True)
        conf_p = e * inv_den

        # NOTE: the reference computes a focal loss here and immediately
        # overwrites it with the BCE result, so it has no effect and is omitted.

        # ---- BCEWithLogitsLoss(reduction='sum') on softmax probs ------------
        # TODO(synk): the reference feeds a [M,1] Long target into
        # BCEWithLogitsLoss with a [M,C] input (a PyTorch shape error); here the
        # target is broadcast across the class axis.
        t = conf_t.astype(jnp.float32)                 # (1, T) -> broadcasts over C
        # x = softmax prob >= 0  =>  max(x,0)=x and |x|=x
        bce = conf_p * (1.0 - t) + jnp.log1p(jnp.exp(-conf_p))
        bce_row = jnp.where(valid, jnp.sum(bce, axis=0, keepdims=True), 0.0)
        out_ref[1:2, :] += bce_row

        # ---- CosineEmbeddingLoss(margin=0.2), per-row ------------------------
        s = sample_ref[...].astype(jnp.float32)        # (C, T)
        dot = jnp.sum(conf_p * s, axis=0, keepdims=True)
        n1 = jnp.sum(conf_p * conf_p, axis=0, keepdims=True) + 1e-12
        n2 = jnp.sum(s * s, axis=0, keepdims=True) + 1e-12
        cos = dot * lax.rsqrt(n1 * n2)
        pos_term = jnp.where(conf_t == 1, 1.0 - cos, 0.0)
        neg_term = jnp.where(conf_t == -1, jnp.maximum(cos - 0.2, 0.0), 0.0)
        out_ref[2:3, :] += pos_term + neg_term

    return kernel


# ----------------------------------------------------------------------------
# Target matching (the torch.no_grad() section of the reference) — plain JAX.
# ----------------------------------------------------------------------------
def _match(priors, targets, clip_length):
    center = priors[:, 0]                                     # [K]
    maxn = jnp.float32(clip_length * 2.0)

    def one(t):
        truths = t[:, :2]                                     # [N, 2]
        labels = t[:, 2]                                      # [N]
        left = (center[:, None] - truths[None, :, 0]) * clip_length   # [K, N]
        right = (truths[None, :, 1] - center[:, None]) * clip_length  # [K, N]
        area = left + right
        area = jnp.where((left < 0.0) | (right < 0.0), maxn, area)
        best_area = jnp.min(area, axis=1)                     # [K]
        best_idx = jnp.argmin(area, axis=1)                   # [K]
        loc0 = (center - truths[best_idx, 0]) * clip_length
        loc1 = (truths[best_idx, 1] - center) * clip_length
        loc = jnp.stack([loc0, loc1], axis=1)                 # [K, 2]
        conf = jnp.where(best_area >= maxn, 0.0, labels[best_idx]).astype(jnp.int32)
        if t.shape[0] == 1:
            # degenerate "no ground truth" branch of the reference
            conf = jnp.where(labels[0] == 0, jnp.zeros_like(conf), conf)
        return loc, conf

    return jax.vmap(one)(targets)


# ----------------------------------------------------------------------------
# Wrapper: lane-dense reshape glue + tiled pallas_call + scalar normalisation.
# ----------------------------------------------------------------------------
def multi_segment_loss(loc_data, conf_data, priors, sample_conf_data, targets,
                       *, num_classes, clip_length):
    B, K, _ = loc_data.shape
    C = num_classes
    M = B * K

    loc_t, conf_t = _match(priors.astype(jnp.float32),
                           targets.astype(jnp.float32),
                           float(clip_length))

    # lane-dense layout: priors (M) on the 128-lane axis, tiny feature dims
    # (2 loc coords / C classes / 1 label) on sublanes.
    loc_p_cm = loc_data.reshape(M, 2).astype(jnp.float32).T       # (2, M)
    loc_t_cm = loc_t.reshape(M, 2).astype(jnp.float32).T          # (2, M)
    conf_cm = conf_data.reshape(M, C).T                           # (C, M) native dtype
    sample_cm = sample_conf_data.reshape(M, C).T                  # (C, M) native dtype
    conf_t_row = conf_t.reshape(1, M).astype(jnp.int32)           # (1, M)

    # TILE_M: largest 128-multiple under a modest double-buffered VMEM budget
    # (safe on v7x's 64 MiB VMEM; capped so small problems don't over-pad).
    itemsize = jnp.dtype(conf_data.dtype).itemsize
    col_bytes = 8 + 8 + 4 + 2 * C * itemsize      # per-column input bytes
    budget = 6 * 1024 * 1024
    tile_m = (budget // (2 * col_bytes) // 128) * 128
    tile_m = max(128, min(4096, tile_m, _round_up(M, 128)))
    m_pad = _round_up(M, _NCORES * tile_m)
    inner = m_pad // (_NCORES * tile_m)

    pad = m_pad - M
    loc_p_cm = jnp.pad(loc_p_cm, ((0, 0), (0, pad)))
    loc_t_cm = jnp.pad(loc_t_cm, ((0, 0), (0, pad)))
    conf_cm = jnp.pad(conf_cm, ((0, 0), (0, pad)))
    sample_cm = jnp.pad(sample_cm, ((0, 0), (0, pad)))
    conf_t_row = jnp.pad(conf_t_row, ((0, 0), (0, pad)))

    col_map = lambda p, i: (0, p * inner + i)

    out = pl.pallas_call(
        _make_loss_kernel(M, tile_m),
        out_shape=jax.ShapeDtypeStruct((_NCORES * 8, tile_m), jnp.float32),
        grid=(_NCORES, inner),
        in_specs=[
            pl.BlockSpec((2, tile_m), col_map),
            pl.BlockSpec((2, tile_m), col_map),
            pl.BlockSpec((C, tile_m), col_map),
            pl.BlockSpec((C, tile_m), col_map),
            pl.BlockSpec((1, tile_m), col_map),
        ],
        out_specs=pl.BlockSpec((8, tile_m), lambda p, i: (p, 0)),
        compiler_params=pltpu.CompilerParams(
            dimension_semantics=("parallel", "arbitrary")),
    )(loc_p_cm, loc_t_cm, conf_cm, sample_cm, conf_t_row)

    # final lane + core reduction (tiny) in plain JAX
    sums = jnp.sum(out.reshape(_NCORES, 8, tile_m), axis=(0, 2))  # (8,)
    loss_l_sum, loss_c_sum, loss_con_sum = sums[0], sums[1], sums[2]

    n_pos = jnp.sum((conf_t > 0).astype(jnp.float32))   # derived from _match output
    n = jnp.maximum(n_pos, 1.0)                         # N = max(pos.sum(), 1)
    loss_l = loss_l_sum / n
    loss_c = loss_c_sum / n
    loss_con = loss_con_sum / jnp.float32(M)            # CosineEmbeddingLoss 'mean'
    return loss_l, loss_c, loss_con


if __name__ == "__main__":
    B, K, C, N = 2, 16, 2, 3          # batch, priors, num_classes, gt-per-clip
    clip_length = 16

    key = jax.random.PRNGKey(0)
    k1, k2, k3 = jax.random.split(key, 3)
    loc_data = jnp.abs(jax.random.normal(k1, (B, K, 2), jnp.float32))
    conf_data = jax.random.normal(k2, (B, K, C), jnp.float32)
    sample_conf_data = jax.random.normal(k3, (B, K, C), jnp.float32)
    priors = ((jnp.arange(K, dtype=jnp.float32) + 0.5) / K).reshape(K, 1)
    targets = jnp.array(
        [[[0.10, 0.40, 1.0],
          [0.50, 0.90, 1.0],
          [0.20, 0.70, 1.0]],
         [[0.05, 0.30, 1.0],
          [0.35, 0.60, 1.0],
          [0.65, 0.95, 1.0]]], dtype=jnp.float32)

    losses = multi_segment_loss(loc_data, conf_data, priors, sample_conf_data,
                                targets, num_classes=C, clip_length=clip_length)
    jax.block_until_ready(losses)
    print("KERNEL_OK")
</pallas_src>

<mosaic_0001>
module attributes {stable_mosaic.version = 11 : i64} {
  func.func @kernel(%arg0: i32, %arg1: i32, %arg2: memref<2x128xf32, #tpu.memory_space<vmem>>, %arg3: memref<2x128xf32, #tpu.memory_space<vmem>>, %arg4: memref<2x128xf32, #tpu.memory_space<vmem>>, %arg5: memref<2x128xf32, #tpu.memory_space<vmem>>, %arg6: memref<1x128xi32, #tpu.memory_space<vmem>>, %arg7: memref<8x128xf32, #tpu.memory_space<vmem>>) attributes {dimension_semantics = [#tpu.dimension_semantics<parallel>, #tpu.dimension_semantics<arbitrary>], iteration_bounds = array<i64: 2, 1>, scalar_prefetch = 0 : i64, scratch_operands = 0 : i64, tpu.core_type = #tpu.core_type<tc>, window_params = [{transform_indices = @transform_0, window_bounds = array<i64: 2, 128>}, {transform_indices = @transform_1, window_bounds = array<i64: 2, 128>}, {transform_indices = @transform_2, window_bounds = array<i64: 2, 128>}, {transform_indices = @transform_3, window_bounds = array<i64: 2, 128>}, {transform_indices = @transform_4, window_bounds = array<i64: 1, 128>}, {transform_indices = @transform_5, window_bounds = array<i64: 8, 128>}]} {
    %c0_i32 = arith.constant 0 : i32
    %0 = arith.cmpi eq, %arg1, %c0_i32 : i32
    %1 = arith.extui %0 : i1 to i32
    %c0_i32_0 = arith.constant 0 : i32
    %2 = arith.cmpi ne, %1, %c0_i32_0 : i32
    scf.if %2 {
      %cst_41 = arith.constant 0.000000e+00 : f32
      %108 = vector.broadcast %cst_41 : f32 to vector<8x128xf32>
      %c0_42 = arith.constant 0 : index
      %c0_43 = arith.constant 0 : index
      %109 = vector.load %arg7[%c0_42, %c0_43] : memref<8x128xf32, #tpu.memory_space<vmem>>, vector<8x128xf32>
      tpu.vector_store %arg7[%c0_42, %c0_43], %108 {strides = array<i32>} : memref<8x128xf32, #tpu.memory_space<vmem>>, vector<8x128xf32>,
    } else {
    }
    %c0 = arith.constant 0 : index
    %c0_1 = arith.constant 0 : index
    %3 = vector.load %arg6[%c0, %c0_1] : memref<1x128xi32, #tpu.memory_space<vmem>>, vector<1x128xi32>
    %c0_i32_2 = arith.constant 0 : i32
    %4 = vector.broadcast %c0_i32_2 : i32 to vector<1x128xi32>
    %5 = arith.cmpi sgt, %3, %4 : vector<1x128xi32>
    %c1_i32 = arith.constant 1 : i32
    %6 = arith.muli %arg0, %c1_i32 : i32
    %7 = arith.addi %6, %arg1 : i32
    %c128_i32 = arith.constant 128 : i32
    %8 = arith.muli %7, %c128_i32 : i32
    %9 = tpu.iota {dimensions = array<i32: 1>} : vector<1x128xi32>
    %10 = vector.broadcast %8 : i32 to vector<1x128xi32>
    %11 = arith.addi %10, %9 : vector<1x128xi32>
    %c32_i32 = arith.constant 32 : i32
    %12 = vector.broadcast %c32_i32 : i32 to vector<1x128xi32>
    %13 = arith.cmpi slt, %11, %12 : vector<1x128xi32>
    %c0_3 = arith.constant 0 : index
    %c0_4 = arith.constant 0 : index
    %14 = vector.load %arg2[%c0_3, %c0_4] : memref<2x128xf32, #tpu.memory_space<vmem>>, vector<2x128xf32>
    %c0_5 = arith.constant 0 : index
    %c0_6 = arith.constant 0 : index
    %15 = vector.load %arg3[%c0_5, %c0_6] : memref<2x128xf32, #tpu.memory_space<vmem>>, vector<2x128xf32>
    %16 = vector.extract_strided_slice %14 {offsets = [0, 0], sizes = [1, 128], strides = [1, 1]} : vector<2x128xf32> to vector<1x128xf32>
    %17 = vector.extract_strided_slice %14 {offsets = [1, 0], sizes = [1, 128], strides = [1, 1]} : vector<2x128xf32> to vector<1x128xf32>
    %18 = vector.extract_strided_slice %15 {offsets = [0, 0], sizes = [1, 128], strides = [1, 1]} : vector<2x128xf32> to vector<1x128xf32>
    %19 = vector.extract_strided_slice %15 {offsets = [1, 0], sizes = [1, 128], strides = [1, 1]} : vector<2x128xf32> to vector<1x128xf32>
    %20 = arith.addf %16, %17 : vector<1x128xf32>
    %21 = arith.addf %18, %19 : vector<1x128xf32>
    %22 = arith.minimumf %16, %18 : vector<1x128xf32>
    %23 = arith.minimumf %17, %19 : vector<1x128xf32>
    %24 = arith.addf %22, %23 : vector<1x128xf32>
    %25 = arith.addf %21, %20 : vector<1x128xf32>
    %26 = arith.subf %25, %24 : vector<1x128xf32>
    %cst = arith.constant 1.1920929E-7 : f32
    %27 = vector.broadcast %cst : f32 to vector<1x128xf32>
    %28 = arith.maximumf %26, %27 : vector<1x128xf32>
    %29 = arith.divf %24, %28 : vector<1x128xf32>
    %30 = arith.maximumf %16, %18 : vector<1x128xf32>
    %31 = arith.maximumf %17, %19 : vector<1x128xf32>
    %32 = arith.addf %30, %31 : vector<1x128xf32>
    %33 = arith.subf %32, %26 : vector<1x128xf32>
    %cst_7 = arith.constant 1.1920929E-7 : f32
    %34 = vector.broadcast %cst_7 : f32 to vector<1x128xf32>
    %35 = arith.maximumf %32, %34 : vector<1x128xf32>
    %36 = arith.divf %33, %35 : vector<1x128xf32>
    %37 = arith.subf %29, %36 : vector<1x128xf32>
    %cst_8 = arith.constant 1.000000e+00 : f32
    %38 = vector.broadcast %cst_8 : f32 to vector<1x128xf32>
    %39 = arith.subf %38, %37 : vector<1x128xf32>
    %cst_9 = arith.constant 0.000000e+00 : f32
    %40 = vector.broadcast %cst_9 : f32 to vector<1x128xf32>
    %41 = arith.select %5, %39, %40 : vector<1x128xi1>, vector<1x128xf32>
    %c0_10 = arith.constant 0 : index
    %c0_11 = arith.constant 0 : index
    %42 = vector.load %arg7[%c0_10, %c0_11] : memref<8x128xf32, #tpu.memory_space<vmem>>, vector<1x128xf32>
    %43 = arith.addf %42, %41 : vector<1x128xf32>
    %c0_12 = arith.constant 0 : index
    %c0_13 = arith.constant 0 : index
    %44 = vector.load %arg7[%c0_12, %c0_13] : memref<8x128xf32, #tpu.memory_space<vmem>>, vector<1x128xf32>
    tpu.vector_store %arg7[%c0_12, %c0_13], %43 {strides = array<i32>} : memref<8x128xf32, #tpu.memory_space<vmem>>, vector<1x128xf32>,
    %c0_14 = arith.constant 0 : index
    %c0_15 = arith.constant 0 : index
    %45 = vector.load %arg4[%c0_14, %c0_15] : memref<2x128xf32, #tpu.memory_space<vmem>>, vector<2x128xf32>
    %cst_16 = arith.constant dense<0xFF800000> : vector<128xf32>
    %46 = vector.multi_reduction <maximumf>, %45, %cst_16 [0] : vector<2x128xf32> to vector<128xf32>
    %47 = vector.shape_cast %46 : vector<128xf32> to vector<1x128xf32>
    %48 = vector.broadcast %47 : vector<1x128xf32> to vector<2x128xf32>
    %49 = arith.subf %45, %48 : vector<2x128xf32>
    %50 = math.exp %49 : vector<2x128xf32>
    %cst_17 = arith.constant dense<0.000000e+00> : vector<128xf32>
    %51 = vector.multi_reduction <add>, %50, %cst_17 [0] : vector<2x128xf32> to vector<128xf32>
    %52 = vector.shape_cast %51 : vector<128xf32> to vector<1x128xf32>
    %53 = tpu.reciprocal %52 {approx = true} : vector<1x128xf32> -> vector<1x128xf32>
    %54 = vector.broadcast %53 : vector<1x128xf32> to vector<2x128xf32>
    %55 = arith.mulf %50, %54 : vector<2x128xf32>
    %56 = arith.sitofp %3 : vector<1x128xi32> to vector<1x128xf32>
    %cst_18 = arith.constant 1.000000e+00 : f32
    %57 = vector.broadcast %cst_18 : f32 to vector<1x128xf32>
    %58 = arith.subf %57, %56 : vector<1x128xf32>
    %59 = vector.broadcast %58 : vector<1x128xf32> to vector<2x128xf32>
    %60 = arith.mulf %55, %59 : vector<2x128xf32>
    %cst_19 = arith.constant 0.000000e+00 : f32
    %61 = vector.broadcast %cst_19 : f32 to vector<2x128xf32>
    %62 = arith.subf %61, %55 : vector<2x128xf32>
    %63 = math.exp %62 : vector<2x128xf32>
    %64 = math.log1p %63 : vector<2x128xf32>
    %65 = arith.addf %60, %64 : vector<2x128xf32>
    %cst_20 = arith.constant dense<0.000000e+00> : vector<128xf32>
    %66 = vector.multi_reduction <add>, %65, %cst_20 [0] : vector<2x128xf32> to vector<128xf32>
    %67 = vector.shape_cast %66 : vector<128xf32> to vector<1x128xf32>
    %cst_21 = arith.constant 0.000000e+00 : f32
    %68 = vector.broadcast %cst_21 : f32 to vector<1x128xf32>
    %69 = arith.select %13, %67, %68 : vector<1x128xi1>, vector<1x128xf32>
    %c1 = arith.constant 1 : index
    %c0_22 = arith.constant 0 : index
    %70 = vector.load %arg7[%c1, %c0_22] : memref<8x128xf32, #tpu.memory_space<vmem>>, vector<1x128xf32>
    %71 = arith.addf %70, %69 : vector<1x128xf32>
    %c1_23 = arith.constant 1 : index
    %c0_24 = arith.constant 0 : index
    %72 = vector.load %arg7[%c1_23, %c0_24] : memref<8x128xf32, #tpu.memory_space<vmem>>, vector<1x128xf32>
    tpu.vector_store %arg7[%c1_23, %c0_24], %71 {strides = array<i32>} : memref<8x128xf32, #tpu.memory_space<vmem>>, vector<1x128xf32>,
    %c0_25 = arith.constant 0 : index
    %c0_26 = arith.constant 0 : index
    %73 = vector.load %arg5[%c0_25, %c0_26] : memref<2x128xf32, #tpu.memory_space<vmem>>, vector<2x128xf32>
    %74 = arith.mulf %55, %73 : vector<2x128xf32>
    %cst_27 = arith.constant dense<0.000000e+00> : vector<128xf32>
    %75 = vector.multi_reduction <add>, %74, %cst_27 [0] : vector<2x128xf32> to vector<128xf32>
    %76 = vector.shape_cast %75 : vector<128xf32> to vector<1x128xf32>
    %77 = arith.mulf %55, %55 : vector<2x128xf32>
    %cst_28 = arith.constant dense<0.000000e+00> : vector<128xf32>
    %78 = vector.multi_reduction <add>, %77, %cst_28 [0] : vector<2x128xf32> to vector<128xf32>
    %79 = vector.shape_cast %78 : vector<128xf32> to vector<1x128xf32>
    %cst_29 = arith.constant 9.99999996E-13 : f32
    %80 = vector.broadcast %cst_29 : f32 to vector<1x128xf32>
    %81 = arith.addf %79, %80 : vector<1x128xf32>
    %82 = arith.mulf %73, %73 : vector<2x128xf32>
    %cst_30 = arith.constant dense<0.000000e+00> : vector<128xf32>
    %83 = vector.multi_reduction <add>, %82, %cst_30 [0] : vector<2x128xf32> to vector<128xf32>
    %84 = vector.shape_cast %83 : vector<128xf32> to vector<1x128xf32>
    %cst_31 = arith.constant 9.99999996E-13 : f32
    %85 = vector.broadcast %cst_31 : f32 to vector<1x128xf32>
    %86 = arith.addf %84, %85 : vector<1x128xf32>
    %87 = arith.mulf %81, %86 : vector<1x128xf32>
    %88 = math.rsqrt %87 : vector<1x128xf32>
    %89 = arith.mulf %76, %88 : vector<1x128xf32>
    %c1_i32_32 = arith.constant 1 : i32
    %90 = vector.broadcast %c1_i32_32 : i32 to vector<1x128xi32>
    %91 = arith.cmpi eq, %3, %90 : vector<1x128xi32>
    %cst_33 = arith.constant 1.000000e+00 : f32
    %92 = vector.broadcast %cst_33 : f32 to vector<1x128xf32>
    %93 = arith.subf %92, %89 : vector<1x128xf32>
    %cst_34 = arith.constant 0.000000e+00 : f32
    %94 = vector.broadcast %cst_34 : f32 to vector<1x128xf32>
    %95 = arith.select %91, %93, %94 : vector<1x128xi1>, vector<1x128xf32>
    %c-1_i32 = arith.constant -1 : i32
    %96 = vector.broadcast %c-1_i32 : i32 to vector<1x128xi32>
    %97 = arith.cmpi eq, %3, %96 : vector<1x128xi32>
    %cst_35 = arith.constant 2.000000e-01 : f32
    %98 = vector.broadcast %cst_35 : f32 to vector<1x128xf32>
    %99 = arith.subf %89, %98 : vector<1x128xf32>
    %cst_36 = arith.constant 0.000000e+00 : f32
    %100 = vector.broadcast %cst_36 : f32 to vector<1x128xf32>
    %101 = arith.maximumf %99, %100 : vector<1x128xf32>
    %cst_37 = arith.constant 0.000000e+00 : f32
    %102 = vector.broadcast %cst_37 : f32 to vector<1x128xf32>
    %103 = arith.select %97, %101, %102 : vector<1x128xi1>, vector<1x128xf32>
    %c2 = arith.constant 2 : index
    %c0_38 = arith.constant 0 : index
    %104 = vector.load %arg7[%c2, %c0_38] : memref<8x128xf32, #tpu.memory_space<vmem>>, vector<1x128xf32>
    %105 = arith.addf %95, %103 : vector<1x128xf32>
    %106 = arith.addf %104, %105 : vector<1x128xf32>
    %c2_39 = arith.constant 2 : index
    %c0_40 = arith.constant 0 : index
    %107 = vector.load %arg7[%c2_39, %c0_40] : memref<8x128xf32, #tpu.memory_space<vmem>>, vector<1x128xf32>
    tpu.vector_store %arg7[%c2_39, %c0_40], %106 {strides = array<i32>} : memref<8x128xf32, #tpu.memory_space<vmem>>, vector<1x128xf32>,
    return
  }
  func.func @transform_0(%arg0: i32, %arg1: i32) -> (i32, i32) {
    %c1_i32 = arith.constant 1 : i32
    %0 = arith.muli %arg0, %c1_i32 : i32
    %1 = arith.addi %0, %arg1 : i32
    %c0_i32 = arith.constant 0 : i32
    %c0_i32_0 = arith.constant 0 : i32
    return %c0_i32, %1 : i32, i32
  }
  func.func @transform_1(%arg0: i32, %arg1: i32) -> (i32, i32) {
    %c1_i32 = arith.constant 1 : i32
    %0 = arith.muli %arg0, %c1_i32 : i32
    %1 = arith.addi %0, %arg1 : i32
    %c0_i32 = arith.constant 0 : i32
    %c0_i32_0 = arith.constant 0 : i32
    return %c0_i32, %1 : i32, i32
  }
  func.func @transform_2(%arg0: i32, %arg1: i32) -> (i32, i32) {
    %c1_i32 = arith.constant 1 : i32
    %0 = arith.muli %arg0, %c1_i32 : i32
    %1 = arith.addi %0, %arg1 : i32
    %c0_i32 = arith.constant 0 : i32
    %c0_i32_0 = arith.constant 0 : i32
    return %c0_i32, %1 : i32, i32
  }
  func.func @transform_3(%arg0: i32, %arg1: i32) -> (i32, i32) {
    %c1_i32 = arith.constant 1 : i32
    %0 = arith.muli %arg0, %c1_i32 : i32
    %1 = arith.addi %0, %arg1 : i32
    %c0_i32 = arith.constant 0 : i32
    %c0_i32_0 = arith.constant 0 : i32
    return %c0_i32, %1 : i32, i32
  }
  func.func @transform_4(%arg0: i32, %arg1: i32) -> (i32, i32) {
    %c1_i32 = arith.constant 1 : i32
    %0 = arith.muli %arg0, %c1_i32 : i32
    %1 = arith.addi %0, %arg1 : i32
    %c0_i32 = arith.constant 0 : i32
    %c0_i32_0 = arith.constant 0 : i32
    return %c0_i32, %1 : i32, i32
  }
  func.func @transform_5(%arg0: i32, %arg1: i32) -> (i32, i32) {
    %c0_i32 = arith.constant 0 : i32
    %c0_i32_0 = arith.constant 0 : i32
    return %arg0, %c0_i32 : i32, i32
  }
}

</mosaic_0001>

<llo_original>
// kernel: tpu_custom_call.1
$region0: #{tpu_custom_call.1}
  #allocation0 [shape = 'u32[]', space=smem, size = 0x4, offset = 0x4, fixed_abs, tag = 'smem constant byte address 0x4 - core index']
  #allocation1 [shape = 'u32[144,128]{1,0:T(1,128)}', space=vmem, size = 0x12000, scoped, tag = 'internal scratch']
  %s0 = inlined_call_operand.hbm [shape: f32[2,256], index: 0, kind: input, shape index: {}]
  %s1 = inlined_call_operand.hbm [shape: f32[2,256], index: 1, kind: input, shape index: {}]
  %s2 = inlined_call_operand.hbm [shape: f32[2,256], index: 2, kind: input, shape index: {}]
  %s3 = inlined_call_operand.vmem [shape: f32[2,256], index: 3, kind: input, shape index: {}]
  %s4 = inlined_call_operand.vmem [shape: s32[1,256], index: 4, kind: input, shape index: {}]
  %s5 = inlined_call_operand.hbm [shape: f32[16,128], index: 5, kind: output, shape index: {}]
  %s6 = sld [smem:[#allocation0]]
  $region69: #{tpu_custom_call.1} parent=0
    _
  %s8 = ssub.s32 1, %s6
  %s9 = scalar_select 0, %s8, %s6
  $region1: #{tpu_custom_call.1} parent=0
    #allocation2 [shape = 'u8[2048]{0}', space=vmem, size = 0x800, scoped, tag = 'input window, operand 0']
    #allocation3 [shape = 's32[2]{0}', space=sflag, size = 0x8, scoped, tag = 'scoped memory for tpu_custom_call.1']
    #allocation4 [shape = 's32[2]{0}', space=sflag, size = 0x8, scoped, tag = 'scoped memory for tpu_custom_call.1']
    #allocation5 [shape = 'u8[2048]{0}', space=vmem, size = 0x800, scoped, tag = 'input window, operand 1']
    #allocation6 [shape = 's32[2]{0}', space=sflag, size = 0x8, scoped, tag = 'scoped memory for tpu_custom_call.1']
    #allocation7 [shape = 'u8[2048]{0}', space=vmem, size = 0x800, scoped, tag = 'input window, operand 2']
    #allocation8 [shape = 'u8[8192]{0}', space=vmem, size = 0x2000, scoped, tag = 'output window, operand 0']
    %10 = vsyncpa [#allocation3], 0
    %s11 = scalar_lea.sflag [#allocation3], 1
    %12 = vsyncpa %s11, 0
    %13 = vsyncpa [#allocation6], 0
    %s14 = scalar_lea.sflag [#allocation6], 1
    %15 = vsyncpa %s14, 0
    %16 = vsyncpa [#allocation4], 0
    %s17 = scalar_lea.sflag [#allocation4], 1
    %18 = vsyncpa %s17, 0
    loop: start=0, step=1, limit=4
    $region2: #{tpu_custom_call.1} parent=1 // loop_pre_header
      _
    $region3: #{tpu_custom_call.1} parent=1 // loop_header
      %s20 = sphi 0, %s24
      %p21 = scmp.ge.s32.totalorder %s20, 4
      %s27 = sphi 0, %s39
      %s28 = sphi 0, %s35
      %s29 = sphi 0, %s27
      %s30 = sphi 0, %s28
      %s31 = sphi 0, %s29
      %s32 = sphi 0, %s30
      %s44 = sphi 0, %s46
      %s47 = sphi 0, %s44
      %s48 = sphi 0, %s47
      %s64 = sphi 0, %s48
      %s72 = sphi 0, %s74
      %s75 = sphi 0, %s72
      %s76 = sphi 0, %s75
      %s92 = sphi 0, %s76
      %s100 = sphi 0, %s102
      %s103 = sphi 0, %s100
      %s104 = sphi 0, %s103
      %s120 = sphi 0, %s104
      %s128 = sphi 0, %s130
      %s131 = sphi 0, %s128
      %s132 = sphi 0, %s131
      %s148 = sphi 0, %s132
      %s156 = sphi 0, %s158
      %s159 = sphi 0, %s156
      %s160 = sphi 0, %s159
      %s176 = sphi 0, %s160
      %s182 = sphi 0, %s184
      %s185 = sphi 0, %s182
      %s186 = sphi 0, %s185
      %s202 = sphi 0, %s186
    $region4: #{tpu_custom_call.1} parent=1 // loop_header_branch
      %23 = sbr.rel (%p21) target = $region8
    $region5: #{tpu_custom_call.1} parent=1 // loop_body
      %s25 = ssub.s32 %s20, 1
      %s26 = ssub.s32 %s20, 2
      %s33 = sadd.s32 1, %s28
      %p34 = scmp.ge.s32.totalorder %s33, 1
      %s35 = scalar_select %p34, 0, %s33
      %s36 = sadd.s32 1, %s27
      %s37 = scalar_select %p34, %s36, %s27
      %p38 = scmp.ge.s32.totalorder %s37, 2
      %s39 = scalar_select %p38, 0, %s37
      %s40 = sadd.s32 %s27, %s28
      %s41 = sadd.s32 %s39, %s35
      %s42 = ssub.s32 %s40, %s41
      %p43 = scmp.eq.s32.totalorder %s42, 0
      %s45 = sadd.s32 %s44, 1
      %s46 = scalar_select %p43, %s44, %s45
      %p49 = pneg %p43
      %p50 = scmp.eq.s32.totalorder %s20, 1
      %p51 = por %p49, %p50
      %p52 = scmp.ne.s32.totalorder %s44, %s47
      %p53 = scmp.eq.s32.totalorder %s20, 0
      %p54 = por %p52, %p53
      %p55 = scmp.ne.s32.totalorder %s44, %s47
      %p56 = scmp.eq.s32.totalorder %s25, 1
      %p57 = por %p55, %p56
      %p58 = scmp.ne.s32.totalorder %s47, %s48
      %p59 = scmp.eq.s32.totalorder %s25, 0
      %p60 = por %p58, %p59
      %p61 = scmp.ne.s32.totalorder %s47, %s48
      %p62 = scmp.eq.s32.totalorder %s26, 1
      %p63 = por %p61, %p62
      %p65 = scmp.ne.s32.totalorder %s48, %s64
      %p66 = scmp.eq.s32.totalorder %s26, 0
      %p67 = por %p65, %p66
      %s68 = sadd.s32 %s27, %s28
      %s69 = sadd.s32 %s39, %s35
      %s70 = ssub.s32 %s68, %s69
      %p71 = scmp.eq.s32.totalorder %s70, 0
      %s73 = sadd.s32 %s72, 1
      %s74 = scalar_select %p71, %s72, %s73
      %p77 = pneg %p71
      %p78 = scmp.eq.s32.totalorder %s20, 1
      %p79 = por %p77, %p78
      %p80 = scmp.ne.s32.totalorder %s72, %s75
      %p81 = scmp.eq.s32.totalorder %s20, 0
      %p82 = por %p80, %p81
      %p83 = scmp.ne.s32.totalorder %s72, %s75
      %p84 = scmp.eq.s32.totalorder %s25, 1
      %p85 = por %p83, %p84
      %p86 = scmp.ne.s32.totalorder %s75, %s76
      %p87 = scmp.eq.s32.totalorder %s25, 0
      %p88 = por %p86, %p87
      %p89 = scmp.ne.s32.totalorder %s75, %s76
      %p90 = scmp.eq.s32.totalorder %s26, 1
      %p91 = por %p89, %p90
      %p93 = scmp.ne.s32.totalorder %s76, %s92
      %p94 = scmp.eq.s32.totalorder %s26, 0
      %p95 = por %p93, %p94
      %s96 = sadd.s32 %s27, %s28
      %s97 = sadd.s32 %s39, %s35
      %s98 = ssub.s32 %s96, %s97
      %p99 = scmp.eq.s32.totalorder %s98, 0
      %s101 = sadd.s32 %s100, 1
      %s102 = scalar_select %p99, %s100, %s101
      %p105 = pneg %p99
      %p106 = scmp.eq.s32.totalorder %s20, 1
      %p107 = por %p105, %p106
      %p108 = scmp.ne.s32.totalorder %s100, %s103
      %p109 = scmp.eq.s32.totalorder %s20, 0
      %p110 = por %p108, %p109
      %p111 = scmp.ne.s32.totalorder %s100, %s103
      %p112 = scmp.eq.s32.totalorder %s25, 1
      %p113 = por %p111, %p112
      %p114 = scmp.ne.s32.totalorder %s103, %s104
      %p115 = scmp.eq.s32.totalorder %s25, 0
      %p116 = por %p114, %p115
      %p117 = scmp.ne.s32.totalorder %s103, %s104
      %p118 = scmp.eq.s32.totalorder %s26, 1
      %p119 = por %p117, %p118
      %p121 = scmp.ne.s32.totalorder %s104, %s120
      %p122 = scmp.eq.s32.totalorder %s26, 0
      %p123 = por %p121, %p122
      %s124 = sadd.s32 %s27, %s28
      %s125 = sadd.s32 %s39, %s35
      %s126 = ssub.s32 %s124, %s125
      %p127 = scmp.eq.s32.totalorder %s126, 0
      %s129 = sadd.s32 %s128, 1
      %s130 = scalar_select %p127, %s128, %s129
      %p133 = pneg %p127
      %p134 = scmp.eq.s32.totalorder %s20, 1
      %p135 = por %p133, %p134
      %p136 = scmp.ne.s32.totalorder %s128, %s131
      %p137 = scmp.eq.s32.totalorder %s20, 0
      %p138 = por %p136, %p137
      %p139 = scmp.ne.s32.totalorder %s128, %s131
      %p140 = scmp.eq.s32.totalorder %s25, 1
      %p141 = por %p139, %p140
      %p142 = scmp.ne.s32.totalorder %s131, %s132
      %p143 = scmp.eq.s32.totalorder %s25, 0
      %p144 = por %p142, %p143
      %p145 = scmp.ne.s32.totalorder %s131, %s132
      %p146 = scmp.eq.s32.totalorder %s26, 1
      %p147 = por %p145, %p146
      %p149 = scmp.ne.s32.totalorder %s132, %s148
      %p150 = scmp.eq.s32.totalorder %s26, 0
      %p151 = por %p149, %p150
      %s152 = sadd.s32 %s27, %s28
      %s153 = sadd.s32 %s39, %s35
      %s154 = ssub.s32 %s152, %s153
      %p155 = scmp.eq.s32.totalorder %s154, 0
      %s157 = sadd.s32 %s156, 1
      %s158 = scalar_select %p155, %s156, %s157
      %p161 = pneg %p155
      %p162 = scmp.eq.s32.totalorder %s20, 1
      %p163 = por %p161, %p162
      %p164 = scmp.ne.s32.totalorder %s156, %s159
      %p165 = scmp.eq.s32.totalorder %s20, 0
      %p166 = por %p164, %p165
      %p167 = scmp.ne.s32.totalorder %s156, %s159
      %p168 = scmp.eq.s32.totalorder %s25, 1
      %p169 = por %p167, %p168
      %p170 = scmp.ne.s32.totalorder %s159, %s160
      %p171 = scmp.eq.s32.totalorder %s25, 0
      %p172 = por %p170, %p171
      %p173 = scmp.ne.s32.totalorder %s159, %s160
      %p174 = scmp.eq.s32.totalorder %s26, 1
      %p175 = por %p173, %p174
      %p177 = scmp.ne.s32.totalorder %s160, %s176
      %p178 = scmp.eq.s32.totalorder %s26, 0
      %p179 = por %p177, %p178
      %s180 = ssub.s32 %s27, %s39
      %p181 = scmp.eq.s32.totalorder %s180, 0
      %s183 = sadd.s32 %s182, 1
      %s184 = scalar_select %p181, %s182, %s183
      %p187 = pneg %p181
      %p188 = scmp.eq.s32.totalorder %s20, 1
      %p189 = por %p187, %p188
      %p190 = scmp.ne.s32.totalorder %s182, %s185
      %p191 = scmp.eq.s32.totalorder %s20, 0
      %p192 = por %p190, %p191
      %p193 = scmp.ne.s32.totalorder %s182, %s185
      %p194 = scmp.eq.s32.totalorder %s25, 1
      %p195 = por %p193, %p194
      %p196 = scmp.ne.s32.totalorder %s185, %s186
      %p197 = scmp.eq.s32.totalorder %s25, 0
      %p198 = por %p196, %p197
      %p199 = scmp.ne.s32.totalorder %s185, %s186
      %p200 = scmp.eq.s32.totalorder %s26, 1
      %p201 = por %p199, %p200
      %p203 = scmp.ne.s32.totalorder %s186, %s202
      %p204 = scmp.eq.s32.totalorder %s26, 0
      %p205 = por %p203, %p204
      %p206 = scmp.le.s32.totalorder 1, %s20
      %p207 = scmp.lt.s32.totalorder %s20, 3
      %p208 = pnand %p206, %p207
      %p209 = pneg %p208
      // Predicated region
      $region9: #{tpu_custom_call.1} parent=5 // pred_check
        _
      $region10: #{tpu_custom_call.1} parent=5 // pred_check_branch
        %211 = sbr.rel (%p208) target = $region12
      $region11: #{tpu_custom_call.1} parent=5 // pred_region
        %s212 = ssub.s32 %s20, 1
      $region12: #{tpu_custom_call.1} parent=5 // pred_fallthru
        _
      %p213 = scmp.lt.s32.totalorder %s20, 2
      // Predicated region
      $region13: #{tpu_custom_call.1} parent=5 // pred_check
        %p214 = pneg %p213
      $region14: #{tpu_custom_call.1} parent=5 // pred_check_branch
        %216 = sbr.rel (%p214) target = $region16
      $region15: #{tpu_custom_call.1} parent=5 // pred_region
        // Predicated region
        $region17: #{tpu_custom_call.1} parent=15 // pred_check
          %p217 = pneg %p54
        $region18: #{tpu_custom_call.1} parent=15 // pred_check_branch
          %219 = sbr.rel (%p217) target = $region20
        $region19: #{tpu_custom_call.1} parent=15 // pred_region
          %s220 = sand.u32 %s44, 1
          %s221 = scalar_lea.sflag [#allocation3], %s220
          %s222 = sand.u32 %s44, 1
          %s223 = smul.addr %s222, 2
          %s224 = scalar_lea.vmem [#allocation2], %s223
          %s225 = sadd.s32 %s27, %s28
          %s227 = ssub.s32 32, 32
          %228 = vsyncadd %s221, %s227
          %s229 = smul.addr %s225, 32
          %s230 = scalar_lea.hbm %s0, %s229
          %s232 = sshll.u32 %s224, 4
          %s233 = int_to_ptr.vmem [resolvable:$true] %s232
          %235 = dma.hbm_to_vmem [thread:$0]  %s230, 32, %s233, %s221
        $region20: #{tpu_custom_call.1} parent=15 // pred_fallthru
          _
        // Predicated region
        $region21: #{tpu_custom_call.1} parent=15 // pred_check
          %p236 = pneg %p82
        $region22: #{tpu_custom_call.1} parent=15 // pred_check_branch
          %238 = sbr.rel (%p236) target = $region24
        $region23: #{tpu_custom_call.1} parent=15 // pred_region
          %s239 = sand.u32 %s20, 1
          %s240 = scalar_lea.sflag [#allocation6], %s239
          %s241 = sand.u32 %s72, 1
          %s242 = smul.addr %s241, 2
          %s243 = scalar_lea.vmem [#allocation5], %s242
          %s244 = sadd.s32 %s27, %s28
          %s246 = ssub.s32 32, 32
          %247 = vsyncadd %s240, %s246
          %s248 = smul.addr %s244, 32
          %s249 = scalar_lea.hbm %s1, %s248
          %s251 = sshll.u32 %s243, 4
          %s252 = int_to_ptr.vmem [resolvable:$true] %s251
          %254 = dma.hbm_to_vmem [thread:$0]  %s249, 32, %s252, %s240
        $region24: #{tpu_custom_call.1} parent=15 // pred_fallthru
          _
        // Predicated region
        $region25: #{tpu_custom_call.1} parent=15 // pred_check
          %p255 = pneg %p110
        $region26: #{tpu_custom_call.1} parent=15 // pred_check_branch
          %257 = sbr.rel (%p255) target = $region28
        $region27: #{tpu_custom_call.1} parent=15 // pred_region
          %s258 = sand.u32 %s20, 1
          %s259 = scalar_lea.sflag [#allocation6], %s258
          %s260 = sand.u32 %s100, 1
          %s261 = smul.addr %s260, 2
          %s262 = scalar_lea.vmem [#allocation7], %s261
          %s263 = sadd.s32 %s27, %s28
          %s265 = ssub.s32 32, 32
          %266 = vsyncadd %s259, %s265
          %s267 = smul.addr %s263, 32
          %s268 = scalar_lea.hbm %s2, %s267
          %s270 = sshll.u32 %s262, 4
          %s271 = int_to_ptr.vmem [resolvable:$true] %s270
          %273 = dma.hbm_to_vmem [thread:$0]  %s268, 32, %s271, %s259
        $region28: #{tpu_custom_call.1} parent=15 // pred_fallthru
          _
        // Predicated region
        $region29: #{tpu_custom_call.1} parent=15 // pred_check
          %p274 = pneg %p138
        $region30: #{tpu_custom_call.1} parent=15 // pred_check_branch
          %276 = sbr.rel (%p274) target = $region32
        $region31: #{tpu_custom_call.1} parent=15 // pred_region
          %s277 = sadd.s32 %s27, %s28
          %p278 = scmp.lt.s32.totalorder %s277, 1
          %s279 = scalar_select %p278, %s277, 1
          %s280 = smul.addr %s279, 2
          %s281 = scalar_lea.vmem %s3, %s280
          %s282 = sadd.s32 %s27, %s28
        $region32: #{tpu_custom_call.1} parent=15 // pred_fallthru
          _
        // Predicated region
        $region33: #{tpu_custom_call.1} parent=15 // pred_check
          %p283 = pneg %p166
        $region34: #{tpu_custom_call.1} parent=15 // pred_check_branch
          %285 = sbr.rel (%p283) target = $region36
        $region35: #{tpu_custom_call.1} parent=15 // pred_region
          %s286 = sadd.s32 %s27, %s28
          %p287 = scmp.lt.s32.totalorder %s286, 1
          %s288 = scalar_select %p287, %s286, 1
          %s289 = scalar_lea.vmem %s4, %s288
          %s290 = sadd.s32 %s27, %s28
        $region36: #{tpu_custom_call.1} parent=15 // pred_fallthru
          _
      $region16: #{tpu_custom_call.1} parent=5 // pred_fallthru
        _
      %p291 = scmp.le.s32.totalorder 1, %s20
      %p292 = scmp.lt.s32.totalorder %s20, 3
      %p293 = pnand %p291, %p292
      %p294 = pneg %p293
      // Predicated region
      $region37: #{tpu_custom_call.1} parent=5 // pred_check
        _
      $region38: #{tpu_custom_call.1} parent=5 // pred_check_branch
        %296 = sbr.rel (%p293) target = $region40
      $region39: #{tpu_custom_call.1} parent=5 // pred_region
        %s297 = ssub.s32 %s20, 1
        %s298 = sand.u32 %s47, 1
        %s299 = scalar_lea.sflag [#allocation3], %s298
        %s300 = sand.u32 %s47, 1
        %s301 = smul.addr %s300, 2
        %s302 = scalar_lea.vmem [#allocation2], %s301
        // Predicated region
        $region41: #{tpu_custom_call.1} parent=39 // pred_check
          %p303 = pneg %p60
        $region42: #{tpu_custom_call.1} parent=39 // pred_check_branch
          %305 = sbr.rel (%p303) target = $region44
        $region43: #{tpu_custom_call.1} parent=39 // pred_region
          %306 = dma.done %s299, 32
        $region44: #{tpu_custom_call.1} parent=39 // pred_fallthru
          _
        %s307 = sand.u32 %s25, 1
        %s308 = scalar_lea.sflag [#allocation6], %s307
        %s309 = sand.u32 %s75, 1
        %s310 = smul.addr %s309, 2
        %s311 = scalar_lea.vmem [#allocation5], %s310
        // Predicated region
        $region45: #{tpu_custom_call.1} parent=39 // pred_check
          %p312 = pneg %p88
        $region46: #{tpu_custom_call.1} parent=39 // pred_check_branch
          %314 = sbr.rel (%p312) target = $region48
        $region47: #{tpu_custom_call.1} parent=39 // pred_region
          %315 = dma.done %s308, 32
        $region48: #{tpu_custom_call.1} parent=39 // pred_fallthru
          _
        %s316 = sand.u32 %s25, 1
        %s317 = scalar_lea.sflag [#allocation6], %s316
        %s318 = sand.u32 %s103, 1
        %s319 = smul.addr %s318, 2
        %s320 = scalar_lea.vmem [#allocation7], %s319
        // Predicated region
        $region49: #{tpu_custom_call.1} parent=39 // pred_check
          %p321 = pneg %p116
        $region50: #{tpu_custom_call.1} parent=39 // pred_check_branch
          %323 = sbr.rel (%p321) target = $region52
        $region51: #{tpu_custom_call.1} parent=39 // pred_region
          %324 = dma.done %s317, 32
        $region52: #{tpu_custom_call.1} parent=39 // pred_fallthru
          _
        %s325 = sand.u32 %s47, 1
        %s326 = scalar_lea.sflag [#allocation3], %s325
        %s327 = sand.u32 %s47, 1
        %s328 = smul.addr %s327, 2
        %s329 = scalar_lea.vmem [#allocation2], %s328
        %p330 = pneg %p60
        %p331 = pneg %p57
        %s332 = sand.u32 %s25, 1
        %s333 = scalar_lea.sflag [#allocation6], %s332
        %s334 = sand.u32 %s75, 1
        %s335 = smul.addr %s334, 2
        %s336 = scalar_lea.vmem [#allocation5], %s335
        %p337 = pneg %p88
        %p338 = pneg %p85
        %s339 = sand.u32 %s25, 1
        %s340 = scalar_lea.sflag [#allocation6], %s339
        %s341 = sand.u32 %s103, 1
        %s342 = smul.addr %s341, 2
        %s343 = scalar_lea.vmem [#allocation7], %s342
        %p344 = pneg %p116
        %p345 = pneg %p113
        %s346 = sadd.s32 %s29, %s30
        %p347 = scmp.lt.s32.totalorder %s346, 1
        %s348 = scalar_select %p347, %s346, 1
        %s349 = smul.addr %s348, 2
        %s350 = scalar_lea.vmem %s3, %s349
        %p351 = pneg %p144
        %p352 = pneg %p141
        %s353 = sadd.s32 %s29, %s30
        %p354 = scmp.lt.s32.totalorder %s353, 1
        %s355 = scalar_select %p354, %s353, 1
        %s356 = scalar_lea.vmem %s4, %s355
        %p357 = pneg %p172
        %p358 = pneg %p169
        %p359 = pneg %p198
        %p360 = pneg %p195
        %s361 = sand.u32 %s185, 1
        %s362 = scalar_lea.sflag [#allocation4], %s361
        %s363 = sand.u32 %s185, 1
        %s364 = smul.addr %s363, 8
        %s365 = scalar_lea.vmem [#allocation8], %s364
        %s366 = sadd.s32 %s29, %s30
        %s367 = sadd.s32 %s29, %s30
        %s368 = sadd.s32 %s29, %s30
        %s369 = sadd.s32 %s29, %s30
        %p370 = scmp.lt.s32.totalorder %s369, 1
        %s371 = scalar_select %p370, %s369, 1
        %s372 = smul.addr %s371, 2
        %s373 = scalar_lea.vmem %s3, %s372
        %s374 = sadd.s32 %s29, %s30
        %s375 = sadd.s32 %s29, %s30
        %p376 = scmp.lt.s32.totalorder %s375, 1
        %s377 = scalar_select %p376, %s375, 1
        %s378 = scalar_lea.vmem %s4, %s377
        %s379 = sadd.s32 %s29, %s30
        %p380 = scmp.eq.s32.totalorder %s30, 0
        // Predicated region
        $region53: #{tpu_custom_call.1} parent=39 // pred_check
          %p381 = pneg %p380
        $region54: #{tpu_custom_call.1} parent=39 // pred_check_branch
          %383 = sbr.rel (%p381) target = $region56
        $region55: #{tpu_custom_call.1} parent=39 // pred_region
          %384 = vst [vmem:[%s365] sm:$0xff] 0.0
        $region56: #{tpu_custom_call.1} parent=39 // pred_fallthru
          _
        %v385 = vld [vmem:[%s378] sm:$0x1]
        %vm386 = vcmp.gt.s32.totalorder %v385, 0
        %s387 = sadd.s32 %s29, %s30
        %s388 = smul.u32 %s387, 128
        %v389 = vlaneseq
        %v390 = vand.u32 %v389, 127
        %v391 = vstv %s388
        %v392 = vadd.s32 %v391, %v390
        %vm393 = vcmp.lt.s32.totalorder %v392, 32
        %v394 = vld [vmem:[%s302] sm:$0x3]
        %v395 = vld [vmem:[%s311] sm:$0x3]
        %v397 = vrot.slane %v394, 1
        %v399 = vadd.f32 %v394, %v397
        %v401 = vrot.slane %v395, 1
        %v403 = vadd.f32 %v395, %v401
        %v404 = vmin.f32 %v394, %v395
        %v406 = vrot.slane %v404, 1
        %v408 = vadd.f32 %v404, %v406
        %v409 = vadd.f32 %v403, %v399
        %v410 = vsub.f32 %v409, %v408
        %v411 = vmax.f32 %v410, 1.1920929e-07
        %v412 = vrcp.pop %v411
        %v413 = vmul.f32 %v408, %v412
        %v414 = vmax.f32 %v394, %v395
        %v416 = vrot.slane %v414, 1
        %v418 = vadd.f32 %v414, %v416
        %v419 = vsub.f32 %v418, %v410
        %v420 = vmax.f32 %v418, 1.1920929e-07
        %v421 = vrcp.pop %v420
        %v422 = vmul.f32 %v419, %v421
        %v423 = vsub.f32 %v413, %v422
        %v424 = vsub.f32 1.0, %v423
        %v425 = vsel %vm386, %v424, 0.0
        %v426 = vld [vmem:[%s365] sm:$0x1]
        %v427 = vadd.f32 %v426, %v425
        %428 = vst [vmem:[%s365] sm:$0x1] %v427
        %v429 = vld [vmem:[%s320] sm:$0x3]
        %vm430 = vcmask 1041408
        %v431 = vsel %vm430, %v429, -inf
        %v432 = vrot.slane %v431, 4
        %v433 = vmax.f32 %v431, %v432
        %v434 = vrot.slane %v433, 2
        %v435 = vmax.f32 %v433, %v434
        %v436 = vrot.slane %v435, 1
        %v437 = vmax.f32 %v435, %v436
        %v438 = vsub.f32 %v429, %v437
        %v439 = vmul.f32 %v438, 1.442695
        %v440 = vpow.pop %v439
        %v441 = vsel %vm430, %v440, 0.0
        %v442 = vrot.slane %v441, 4
        %v443 = vadd.f32 %v441, %v442
        %v444 = vrot.slane %v443, 2
        %v445 = vadd.f32 %v443, %v444
        %v446 = vrot.slane %v445, 1
        %v447 = vadd.f32 %v445, %v446
        %v448 = vrcp.pop %v447
        %v449 = vmul.f32 %v440, %v448
        %v450 = vcvt.s32.f32 %v385
        %v451 = vsub.f32 1.0, %v450
        %v453 = vlaneseq
        %v454 = vshrl.u32 %v453, 7
        %v455 = vsub.s32 0, %v454
        %v456 = vrot.slane %v451, %v455
        %v458 = vmul.f32 %v449, %v456
        %v459 = vsub.f32 0.0, %v449
        %v460 = vmul.f32 %v459, 1.442695
        %v461 = vpow.pop %v460
        %v462 = vadd.f32 %v461, 1.0
        %v463 = vlog2.pop %v462
        %v464 = vmul.f32 %v463, 0.6931472
        %v465 = vmul.f32 -0.5, %v461
        %v466 = vadd.f32 %v465, 1.0
        %v467 = vmul.f32 %v466, %v461
        %v468 = vand.u32 2147483647, %v461
        %vm469 = vcmp.lt.f32.partialorder %v468, 0.0004427343
        %v470 = vsel %vm469, %v467, %v464
        %v471 = vadd.f32 %v458, %v470
        %v472 = vsel %vm430, %v471, 0.0
        %v473 = vrot.slane %v472, 4
        %v474 = vadd.f32 %v472, %v473
        %v475 = vrot.slane %v474, 2
        %v476 = vadd.f32 %v474, %v475
        %v477 = vrot.slane %v476, 1
        %v478 = vadd.f32 %v476, %v477
        %v479 = vsel %vm393, %v478, 0.0
        %v480 = vld [vmem:[%s365 + $0x1] sm:$0x1]
        %v481 = vadd.f32 %v480, %v479
        %482 = vst [vmem:[%s365 + $0x1] sm:$0x1] %v481
        %v483 = vld [vmem:[%s373] sm:$0x3]
        %v484 = vmul.f32 %v449, %v483
        %v485 = vsel %vm430, %v484, 0.0
        %v486 = vrot.slane %v485, 4
        %v487 = vadd.f32 %v485, %v486
        %v488 = vrot.slane %v487, 2
        %v489 = vadd.f32 %v487, %v488
        %v490 = vrot.slane %v489, 1
        %v491 = vadd.f32 %v489, %v490
        %v492 = vmul.f32 %v449, %v449
        %v493 = vsel %vm430, %v492, 0.0
        %v494 = vrot.slane %v493, 4
        %v495 = vadd.f32 %v493, %v494
        %v496 = vrot.slane %v495, 2
        %v497 = vadd.f32 %v495, %v496
        %v498 = vrot.slane %v497, 1
        %v499 = vadd.f32 %v497, %v498
        %v500 = vadd.f32 %v499, 1e-12
        %v501 = vmul.f32 %v483, %v483
        %v502 = vsel %vm430, %v501, 0.0
        %v503 = vrot.slane %v502, 4
        %v504 = vadd.f32 %v502, %v503
        %v505 = vrot.slane %v504, 2
        %v506 = vadd.f32 %v504, %v505
        %v507 = vrot.slane %v506, 1
        %v508 = vadd.f32 %v506, %v507
        %v509 = vadd.f32 %v508, 1e-12
        %v510 = vmul.f32 %v500, %v509
        %v511 = vrsqrt.pop %v510
        %v512 = vmul.f32 %v491, %v511
        %vm513 = vcmp.eq.s32.totalorder %v385, 1
        %v514 = vsub.f32 1.0, %v512
        %v515 = vsel %vm513, %v514, 0.0
        %vm516 = vcmp.eq.s32.totalorder %v385, 4294967295
        %v517 = vsub.f32 %v512, 0.2
        %v518 = vmax.f32 %v517, 0.0
        %v519 = vsel %vm516, %v518, 0.0
        %v520 = vld [vmem:[%s365 + $0x2] sm:$0x1]
        %v521 = vadd.f32 %v515, %v519
        %v522 = vadd.f32 %v520, %v521
        %523 = vst [vmem:[%s365 + $0x2] sm:$0x1] %v522
        %s524 = sand.u32 %s185, 1
        %s525 = scalar_lea.sflag [#allocation4], %s524
        %s526 = sand.u32 %s185, 1
        %s527 = smul.addr %s526, 8
        %s528 = scalar_lea.vmem [#allocation8], %s527
        // Predicated region
        $region57: #{tpu_custom_call.1} parent=39 // pred_check
          %p529 = pneg %p195
        $region58: #{tpu_custom_call.1} parent=39 // pred_check_branch
          %531 = sbr.rel (%p529) target = $region60
        $region59: #{tpu_custom_call.1} parent=39 // pred_region
          %s533 = ssub.s32 128, 128
          %534 = vsyncadd %s525, %s533
          %s535 = smul.addr %s29, 128
          %s536 = scalar_lea.hbm %s5, %s535
          %s538 = sshll.u32 %s528, 4
          %s539 = int_to_ptr.vmem [resolvable:$true] %s538
          %541 = dma.vmem_to_hbm [thread:$0]  %s539, 128, %s536, %s525
        $region60: #{tpu_custom_call.1} parent=39 // pred_fallthru
          _
      $region40: #{tpu_custom_call.1} parent=5 // pred_fallthru
        _
      %p542 = scmp.le.s32.totalorder 2, %s20
      // Predicated region
      $region61: #{tpu_custom_call.1} parent=5 // pred_check
        %p543 = pneg %p542
      $region62: #{tpu_custom_call.1} parent=5 // pred_check_branch
        %545 = sbr.rel (%p543) target = $region64
      $region63: #{tpu_custom_call.1} parent=5 // pred_region
        %s546 = ssub.s32 %s20, 2
        // Predicated region
        $region65: #{tpu_custom_call.1} parent=63 // pred_check
          %p547 = pneg %p201
        $region66: #{tpu_custom_call.1} parent=63 // pred_check_branch
          %549 = sbr.rel (%p547) target = $region68
        $region67: #{tpu_custom_call.1} parent=63 // pred_region
          %s550 = sand.u32 %s186, 1
          %s551 = scalar_lea.sflag [#allocation4], %s550
          %s552 = sand.u32 %s186, 1
          %s553 = smul.addr %s552, 8
          %s554 = scalar_lea.vmem [#allocation8], %s553
          %555 = dma.done %s551, 128
        $region68: #{tpu_custom_call.1} parent=63 // pred_fallthru
          _
      $region64: #{tpu_custom_call.1} parent=5 // pred_fallthru
        _
    $region6: #{tpu_custom_call.1} parent=1 // loop_footer
      %s24 = sadd.s32 1, %s20
    $region7: #{tpu_custom_call.1} parent=1 // loop_footer_branch
      %19 = sbr.rel target = $region3
    $region8: #{tpu_custom_call.1} parent=1 // loop_exit
      _
    %556 = vsyncpa [#allocation3], 1
    %s557 = scalar_lea.sflag [#allocation3], 1
    %558 = vsyncpa %s557, 1
    %559 = vsyncpa [#allocation6], 1
    %s560 = scalar_lea.sflag [#allocation6], 1
    %561 = vsyncpa %s560, 1
    %562 = vsyncpa [#allocation4], 1
    %s563 = scalar_lea.sflag [#allocation4], 1
    %564 = vsyncpa %s563, 1

</llo_original>
